<compile_context>
chip_gen: v7x
topology: tpu7x:2x2x1
jax: 0.10.0
libtpu: 0.0.40
codegen_flags: <defaults>
</compile_context>

<pallas_src>
import functools

import jax
import jax.numpy as jnp
from jax.experimental import pallas as pl
from jax.experimental.pallas import tpu as pltpu

EPS = 1e-7          # LayerNormalization.epsilon
LN_ALPHA = 1.0      # nn.Parameter(torch.ones(1))
LN_BIAS = 1.0       # nn.Parameter(torch.ones(1))


def _residual_kernel(*refs, with_dropout):
    if with_dropout:
        x_ref, w_ref, b_ref, m_ref, o_ref = refs
    else:
        x_ref, w_ref, b_ref, o_ref = refs
        m_ref = None

    x = x_ref[...].astype(jnp.float32)            # (tm, D)
    d = x.shape[-1]

    # --- LayerNormalization (torch: unbiased std (d-1), eps added to std) ---
    mean = jnp.mean(x, axis=-1, keepdims=True)
    centered = x - mean
    var = jnp.sum(centered * centered, axis=-1, keepdims=True) / (d - 1)
    # one reciprocal per row (tm x 1), broadcast-multiplied -> no per-element divide
    inv = LN_ALPHA / (jnp.sqrt(var) + EPS)
    normed = centered * inv + LN_BIAS

    # --- sub_layer: Linear(D, D), MXU matmul with f32 accumulation ---
    y = jnp.dot(normed.astype(w_ref.dtype), w_ref[...],
                preferred_element_type=jnp.float32)
    y = y + b_ref[...].astype(jnp.float32)        # bias added once, f32

    # --- Dropout: mask already contains keep/(1-p) -> single vmul ---
    if with_dropout:
        y = y * m_ref[...]

    # --- residual add ---
    o_ref[...] = (x + y).astype(o_ref.dtype)


def _round_up(a, m):
    return ((a + m - 1) // m) * m


def residual_connection(x, w, b, *, dropout_rate=0.0, rng_key=None, tm=512,
                        matmul_dtype=jnp.float32):
    """x: (B, S, D) float32; w: (D, D); b: (D,)."""
    B, S, D = x.shape
    M = B * S

    # Row tile: big (default 512) to amortize per-step overhead, clamped for
    # small problems; pad M so the grid covers every row (no silent tail drop).
    tm_eff = min(int(tm), _round_up(M, 8))
    m_pad = _round_up(M, tm_eff)

    x2 = x.reshape(M, D)
    if m_pad != M:
        x2 = jnp.pad(x2, ((0, m_pad - M), (0, 0)))
    b2 = b.reshape(1, D).astype(jnp.float32)
    w_in = w.astype(matmul_dtype)   # bf16 here = half-size weight DMA + MXU fast path

    with_dropout = float(dropout_rate) > 0.0
    inputs = [x2, w_in, b2]
    in_specs = [
        pl.BlockSpec((tm_eff, D), lambda i: (i, 0)),   # x row tile
        pl.BlockSpec((D, D), lambda i: (0, 0)),        # resident weight
        pl.BlockSpec((1, D), lambda i: (0, 0)),        # resident bias
    ]
    if with_dropout:
        if rng_key is None:
            rng_key = jax.random.PRNGKey(0)
        keep_prob = 1.0 - float(dropout_rate)
        keep = jax.random.bernoulli(rng_key, keep_prob, (m_pad, D))
        mask = keep.astype(jnp.float32) * (1.0 / keep_prob)   # inverted-dropout scale folded in
        inputs.append(mask)
        in_specs.append(pl.BlockSpec((tm_eff, D), lambda i: (i, 0)))

    grid = (pl.cdiv(m_pad, tm_eff),)

    # Explicit VMEM budget: resident weight + double-buffered row tiles
    # (x, optional mask, out), clamped to 64 MiB so v7x stays within physical VMEM.
    tile_bytes = tm_eff * D * 4
    n_tiled_streams = 3 if with_dropout else 2
    vmem_est = (D * D * jnp.dtype(matmul_dtype).itemsize
                + 2 * n_tiled_streams * tile_bytes + (2 << 20))
    vmem_limit = int(min(max(vmem_est, 32 * 1024 * 1024), 64 * 1024 * 1024))
    # TODO(synk): for D >= 2048, split the weight/output N dimension into a
    # second grid axis instead of keeping the full DxD weight resident.

    kernel = functools.partial(_residual_kernel, with_dropout=with_dropout)
    out = pl.pallas_call(
        kernel,
        out_shape=jax.ShapeDtypeStruct((m_pad, D), x.dtype),
        grid=grid,
        in_specs=in_specs,
        out_specs=pl.BlockSpec((tm_eff, D), lambda i: (i, 0)),
        compiler_params=pltpu.CompilerParams(
            dimension_semantics=("parallel",),   # rows are independent -> shard on v7x
            vmem_limit_bytes=vmem_limit,
        ),
    )(*inputs)
    return out[:M].reshape(B, S, D)


def reference_no_dropout(x, w, b):
    """Pure-JAX reference of the forward pass with dropout disabled (eval mode)."""
    d = x.shape[-1]
    mean = jnp.mean(x, axis=-1, keepdims=True)
    centered = x - mean
    var = jnp.sum(centered * centered, axis=-1, keepdims=True) / (d - 1)
    std = jnp.sqrt(var)
    normed = LN_ALPHA * centered / (std + EPS) + LN_BIAS
    y = jnp.einsum("bsd,de->bse", normed, w, precision="highest") + b
    return x + y


if __name__ == "__main__":
    B, S, D = 2, 8, 128
    key = jax.random.PRNGKey(0)
    kx, kw, kb, kd = jax.random.split(key, 4)

    x = jax.random.normal(kx, (B, S, D), dtype=jnp.float32)
    # deterministic sub-layer (Linear D->D) parameters
    w = jax.random.normal(kw, (D, D), dtype=jnp.float32) * (1.0 / jnp.sqrt(D))
    b = jax.random.normal(kb, (D,), dtype=jnp.float32) * 0.01

    # 1) eval-mode path (dropout rate 0), fp32 matmul — verify vs pure-JAX reference.
    #    Tolerance covers the TPU MXU f32 matmul path vs. highest-precision einsum.
    out_eval = residual_connection(x, w, b, dropout_rate=0.0)
    jax.block_until_ready(out_eval)
    ref = reference_no_dropout(x, w, b)
    assert jnp.allclose(out_eval, ref, atol=2e-2, rtol=2e-2), "mismatch vs reference"

    # 2) training-mode path with dropout; bf16 MXU fast path (f32 accumulation).
    out_train = residual_connection(x, w, b, dropout_rate=0.1, rng_key=kd,
                                    matmul_dtype=jnp.bfloat16)
    jax.block_until_ready(out_train)
    assert out_train.shape == x.shape

    print("KERNEL_OK")
</pallas_src>

<mosaic_0001>
module attributes {stable_mosaic.version = 11 : i64} {
  func.func @_residual_kernel(%arg0: i32, %arg1: memref<16x128xf32, #tpu.memory_space<vmem>>, %arg2: memref<128x128xf32, #tpu.memory_space<vmem>>, %arg3: memref<1x128xf32, #tpu.memory_space<vmem>>, %arg4: memref<16x128xf32, #tpu.memory_space<vmem>>) attributes {dimension_semantics = [#tpu.dimension_semantics<parallel>], iteration_bounds = array<i64: 1>, scalar_prefetch = 0 : i64, scratch_operands = 0 : i64, tpu.core_type = #tpu.core_type<tc>, window_params = [{transform_indices = @transform_0, window_bounds = array<i64: 16, 128>}, {pipeline_mode = #tpu.pipeline_mode<synchronous>, transform_indices = @transform_1, window_bounds = array<i64: 128, 128>}, {pipeline_mode = #tpu.pipeline_mode<synchronous>, transform_indices = @transform_2, window_bounds = array<i64: 1, 128>}, {transform_indices = @transform_3, window_bounds = array<i64: 16, 128>}]} {
    %c0 = arith.constant 0 : index
    %c0_0 = arith.constant 0 : index
    %0 = vector.load %arg1[%c0, %c0_0] : memref<16x128xf32, #tpu.memory_space<vmem>>, vector<16x128xf32>
    %cst = arith.constant dense<0.000000e+00> : vector<16xf32>
    %1 = vector.multi_reduction <add>, %0, %cst [1] : vector<16x128xf32> to vector<16xf32>
    %2 = vector.shape_cast %1 : vector<16xf32> to vector<16x1xf32>
    %cst_1 = arith.constant 1.280000e+02 : f32
    %3 = vector.broadcast %cst_1 : f32 to vector<16x1xf32>
    %4 = arith.divf %2, %3 : vector<16x1xf32>
    %5 = vector.broadcast %4 : vector<16x1xf32> to vector<16x128xf32>
    %6 = arith.subf %0, %5 : vector<16x128xf32>
    %7 = arith.mulf %6, %6 : vector<16x128xf32>
    %cst_2 = arith.constant dense<0.000000e+00> : vector<16xf32>
    %8 = vector.multi_reduction <add>, %7, %cst_2 [1] : vector<16x128xf32> to vector<16xf32>
    %9 = vector.shape_cast %8 : vector<16xf32> to vector<16x1xf32>
    %cst_3 = arith.constant 1.270000e+02 : f32
    %10 = vector.broadcast %cst_3 : f32 to vector<16x1xf32>
    %11 = arith.divf %9, %10 : vector<16x1xf32>
    %12 = math.sqrt %11 : vector<16x1xf32>
    %cst_4 = arith.constant 1.000000e-07 : f32
    %13 = vector.broadcast %cst_4 : f32 to vector<16x1xf32>
    %14 = arith.addf %12, %13 : vector<16x1xf32>
    %cst_5 = arith.constant 1.000000e+00 : f32
    %15 = vector.broadcast %cst_5 : f32 to vector<16x1xf32>
    %16 = arith.divf %15, %14 : vector<16x1xf32>
    %17 = vector.broadcast %16 : vector<16x1xf32> to vector<16x128xf32>
    %18 = arith.mulf %6, %17 : vector<16x128xf32>
    %cst_6 = arith.constant 1.000000e+00 : f32
    %19 = vector.broadcast %cst_6 : f32 to vector<16x128xf32>
    %20 = arith.addf %18, %19 : vector<16x128xf32>
    %c0_7 = arith.constant 0 : index
    %c0_8 = arith.constant 0 : index
    %21 = vector.load %arg2[%c0_7, %c0_8] : memref<128x128xf32, #tpu.memory_space<vmem>>, vector<128x128xf32>
    %cst_9 = arith.constant dense<0.000000e+00> : vector<16x128xf32>
    %22 = tpu.matmul %20, %21, %cst_9 {dimension_numbers = #tpu.dot_dimension_numbers<[1], [0], [0], [1], [0, 0, 1, 1], [], []>} : vector<16x128xf32>, vector<128x128xf32>, vector<16x128xf32> -> vector<16x128xf32>
    %c0_10 = arith.constant 0 : index
    %c0_11 = arith.constant 0 : index
    %23 = vector.load %arg3[%c0_10, %c0_11] : memref<1x128xf32, #tpu.memory_space<vmem>>, vector<1x128xf32>
    %24 = vector.broadcast %23 : vector<1x128xf32> to vector<16x128xf32>
    %25 = arith.addf %22, %24 : vector<16x128xf32>
    %26 = arith.addf %0, %25 : vector<16x128xf32>
    %c0_12 = arith.constant 0 : index
    %c0_13 = arith.constant 0 : index
    %27 = vector.load %arg4[%c0_12, %c0_13] : memref<16x128xf32, #tpu.memory_space<vmem>>, vector<16x128xf32>
    tpu.vector_store %arg4[%c0_12, %c0_13], %26 {strides = array<i32>} : memref<16x128xf32, #tpu.memory_space<vmem>>, vector<16x128xf32>,
    return
  }
  func.func @transform_0(%arg0: i32) -> (i32, i32) {
    %c0_i32 = arith.constant 0 : i32
    %c0_i32_0 = arith.constant 0 : i32
    return %arg0, %c0_i32 : i32, i32
  }
  func.func @transform_1(%arg0: i32) -> (i32, i32) {
    %c0_i32 = arith.constant 0 : i32
    %c0_i32_0 = arith.constant 0 : i32
    %c0_i32_1 = arith.constant 0 : i32
    return %c0_i32, %c0_i32_0 : i32, i32
  }
  func.func @transform_2(%arg0: i32) -> (i32, i32) {
    %c0_i32 = arith.constant 0 : i32
    %c0_i32_0 = arith.constant 0 : i32
    %c0_i32_1 = arith.constant 0 : i32
    return %c0_i32, %c0_i32_0 : i32, i32
  }
  func.func @transform_3(%arg0: i32) -> (i32, i32) {
    %c0_i32 = arith.constant 0 : i32
    %c0_i32_0 = arith.constant 0 : i32
    return %arg0, %c0_i32 : i32, i32
  }
}

</mosaic_0001>

<llo_original>
// kernel: tpu_custom_call.1
$region0: #{tpu_custom_call.1}
  #allocation0 [shape = 'u32[]', space=smem, size = 0x4, offset = 0x4, fixed_abs, tag = 'smem constant byte address 0x4 - core index']
  #allocation1 [shape = 'u32[144,128]{1,0:T(1,128)}', space=vmem, size = 0x12000, scoped, tag = 'internal scratch']
  %s0 = inlined_call_operand.hbm [shape: f32[16,128], index: 0, kind: input, shape index: {}]
  %s1 = inlined_call_operand.hbm [shape: f32[128,128], index: 1, kind: input, shape index: {}]
  %s2 = inlined_call_operand.vmem [shape: f32[1,128], index: 2, kind: input, shape index: {}]
  %s3 = inlined_call_operand.hbm [shape: f32[16,128], index: 3, kind: output, shape index: {}]
  %s4 = sld [smem:[#allocation0]]
  $region30: #{tpu_custom_call.1} parent=0
    _
  %s6 = ssub.s32 1, %s4
  %s7 = scalar_select 0, %s6, %s4
  $region1: #{tpu_custom_call.1} parent=0
    #allocation2 [shape = 'u8[8192]{0}', space=vmem, size = 0x2000, scoped, tag = 'input window, operand 0, single buffered']
    #allocation3 [shape = 's32[1]{0}', space=sflag, size = 0x4, scoped, tag = 'scoped memory for tpu_custom_call.1']
    #allocation4 [shape = 's32[1]{0}', space=sflag, size = 0x4, scoped, tag = 'scoped memory for tpu_custom_call.1']
    #allocation5 [shape = 'u8[65536]{0}', space=vmem, size = 0x10000, scoped, tag = 'input window, operand 1, single buffered']
    #allocation6 [shape = 's32[1]{0}', space=sflag, size = 0x4, scoped, tag = 'scoped memory for tpu_custom_call.1']
    #allocation7 [shape = 'u8[8192]{0}', space=vmem, size = 0x2000, scoped, tag = 'output window, operand 0, single buffered']
    %8 = vsyncpa [#allocation3], 0
    %9 = vsyncpa [#allocation6], 0
    %10 = vsyncpa [#allocation4], 0
    // Predicated region
    $region2: #{tpu_custom_call.1} parent=1 // pred_check
      _
    $region3: #{tpu_custom_call.1} parent=1 // pred_check_branch
      %12 = sbr.rel (0) target = $region5
    $region4: #{tpu_custom_call.1} parent=1 // pred_region
      %s14 = ssub.s32 256, 256
      %15 = vsyncadd [#allocation3], %s14
      %s16 = sshll.u32 [#allocation2], 4
      %s17 = int_to_ptr.vmem [resolvable:$true] %s16
      %22 = dma.hbm_to_vmem [thread:$0]  %s0, 256, %s17, [#allocation3], 128, 128, 8
    $region5: #{tpu_custom_call.1} parent=1 // pred_fallthru
      _
    // Predicated region
    $region6: #{tpu_custom_call.1} parent=1 // pred_check
      _
    $region7: #{tpu_custom_call.1} parent=1 // pred_check_branch
      %24 = sbr.rel (0) target = $region9
    $region8: #{tpu_custom_call.1} parent=1 // pred_region
      %s26 = ssub.s32 2048, 2048
      %27 = vsyncadd [#allocation6], %s26
      %s28 = sshll.u32 [#allocation5], 4
      %s29 = int_to_ptr.vmem [resolvable:$true] %s28
      %34 = dma.hbm_to_vmem [thread:$0]  %s1, 2048, %s29, [#allocation6], 128, 128, 8
    $region9: #{tpu_custom_call.1} parent=1 // pred_fallthru
      _
    // Predicated region
    $region10: #{tpu_custom_call.1} parent=1 // pred_check
      _
    $region11: #{tpu_custom_call.1} parent=1 // pred_check_branch
      %36 = sbr.rel (0) target = $region13
    $region12: #{tpu_custom_call.1} parent=1 // pred_region
      _
    $region13: #{tpu_custom_call.1} parent=1 // pred_fallthru
      _
    // Predicated region
    $region14: #{tpu_custom_call.1} parent=1 // pred_check
      _
    $region15: #{tpu_custom_call.1} parent=1 // pred_check_branch
      %38 = sbr.rel (0) target = $region17
    $region16: #{tpu_custom_call.1} parent=1 // pred_region
      %39 = dma.done [#allocation3], 256
    $region17: #{tpu_custom_call.1} parent=1 // pred_fallthru
      _
    // Predicated region
    $region18: #{tpu_custom_call.1} parent=1 // pred_check
      _
    $region19: #{tpu_custom_call.1} parent=1 // pred_check_branch
      %41 = sbr.rel (0) target = $region21
    $region20: #{tpu_custom_call.1} parent=1 // pred_region
      %42 = dma.done [#allocation6], 2048
    $region21: #{tpu_custom_call.1} parent=1 // pred_fallthru
      _
    %v43 = vld [vmem:[#allocation2] sm:$0xff]
    %v44 = vld [vmem:[#allocation2 + $0x8] sm:$0xff]
    %45 = vadd.xlane.f32.xlu0 %v43
    %v46 = vpop.xlane.xlu0 %45
    %47 = vadd.xlane.f32.xlu0 %v44
    %v48 = vpop.xlane.xlu0 %47
    %v49 = vrcp.pop 128.0
    %v50 = vmul.f32 %v46, %v49
    %v51 = vmul.f32 %v48, %v49
    %v52 = vsub.f32 %v43, %v50
    %v53 = vsub.f32 %v44, %v51
    %v54 = vmul.f32 %v52, %v52
    %v55 = vmul.f32 %v53, %v53
    %56 = vadd.xlane.f32.xlu0 %v54
    %v57 = vpop.xlane.xlu0 %56
    %58 = vadd.xlane.f32.xlu0 %v55
    %v59 = vpop.xlane.xlu0 %58
    %v60 = vrcp.pop 127.0
    %v61 = vmul.f32 %v57, %v60
    %v62 = vmul.f32 %v59, %v60
    %v63 = vrsqrt.pop %v61
    %v64 = vmul.f32 %v61, %v63
    %vm65 = vcmp.eq.f32.partialorder %v61, inf
    %v66 = vsel %vm65, %v61, %v64
    %vm67 = vcmp.eq.f32.partialorder %v61, 0.0
    %v68 = vand.u32 %v61, 2147483648
    %v69 = vsel %vm67, %v68, %v66
    %v70 = vrsqrt.pop %v62
    %v71 = vmul.f32 %v62, %v70
    %vm72 = vcmp.eq.f32.partialorder %v62, inf
    %v73 = vsel %vm72, %v62, %v71
    %vm74 = vcmp.eq.f32.partialorder %v62, 0.0
    %v75 = vand.u32 %v62, 2147483648
    %v76 = vsel %vm74, %v75, %v73
    %v77 = vadd.f32 %v69, 1e-07
    %v78 = vadd.f32 %v76, 1e-07
    %v79 = vrcp.pop %v77
    %v80 = vmul.f32 1.0, %v79
    %v81 = vrcp.pop %v78
    %v82 = vmul.f32 1.0, %v81
    %v83 = vmul.f32 %v52, %v80
    %v84 = vmul.f32 %v53, %v82
    %v85 = vadd.f32 %v83, 1.0
    %v86 = vadd.f32 %v84, 1.0
    %v87 = vld [vmem:[#allocation5] sm:$0xff]
    %v88 = vld [vmem:[#allocation5 + $0x8] sm:$0xff]
    %v89 = vld [vmem:[#allocation5 + $0x10] sm:$0xff]
    %v90 = vld [vmem:[#allocation5 + $0x18] sm:$0xff]
    %v91 = vld [vmem:[#allocation5 + $0x20] sm:$0xff]
    %v92 = vld [vmem:[#allocation5 + $0x28] sm:$0xff]
    %v93 = vld [vmem:[#allocation5 + $0x30] sm:$0xff]
    %v94 = vld [vmem:[#allocation5 + $0x38] sm:$0xff]
    %v95 = vld [vmem:[#allocation5 + $0x40] sm:$0xff]
    %v96 = vld [vmem:[#allocation5 + $0x48] sm:$0xff]
    %v97 = vld [vmem:[#allocation5 + $0x50] sm:$0xff]
    %v98 = vld [vmem:[#allocation5 + $0x58] sm:$0xff]
    %v99 = vld [vmem:[#allocation5 + $0x60] sm:$0xff]
    %v100 = vld [vmem:[#allocation5 + $0x68] sm:$0xff]
    %v101 = vld [vmem:[#allocation5 + $0x70] sm:$0xff]
    %v102 = vld [vmem:[#allocation5 + $0x78] sm:$0xff]
    %v103 = vld [vmem:[%s2] sm:$0x1]
    %v105 = vlaneseq
    %v106 = vshrl.u32 %v105, 7
    %v107 = vsub.s32 0, %v106
    %v108 = vrot.slane %v103, %v107
    %110 = vmatprep.subr.mxu0 0.0
    %111 = vmatpush1.msra.mxu0 %v87
    %112 = vmatprep.subr.mxu0 0.0
    %113 = vmatpush1.msra.mxu0 %v88
    %114 = vmatprep.subr.mxu0 0.0
    %115 = vmatpush1.msra.mxu0 %v89
    %116 = vmatprep.subr.mxu0 0.0
    %117 = vmatpush1.msra.mxu0 %v90
    %118 = vmatprep.subr.mxu0 0.0
    %119 = vmatpush1.msra.mxu0 %v91
    %120 = vmatprep.subr.mxu0 0.0
    %121 = vmatpush1.msra.mxu0 %v92
    %122 = vmatprep.subr.mxu0 0.0
    %123 = vmatpush1.msra.mxu0 %v93
    %124 = vmatprep.subr.mxu0 0.0
    %125 = vmatpush1.msra.mxu0 %v94
    %126 = vmatprep.subr.mxu0 0.0
    %127 = vmatpush1.msra.mxu0 %v95
    %128 = vmatprep.subr.mxu0 0.0
    %129 = vmatpush1.msra.mxu0 %v96
    %130 = vmatprep.subr.mxu0 0.0
    %131 = vmatpush1.msra.mxu0 %v97
    %132 = vmatprep.subr.mxu0 0.0
    %133 = vmatpush1.msra.mxu0 %v98
    %134 = vmatprep.subr.mxu0 0.0
    %135 = vmatpush1.msra.mxu0 %v99
    %136 = vmatprep.subr.mxu0 0.0
    %137 = vmatpush1.msra.mxu0 %v100
    %138 = vmatprep.subr.mxu0 0.0
    %139 = vmatpush1.msra.mxu0 %v101
    %140 = vmatprep.subr.mxu0 0.0
    %141 = vmatpush1.msra.mxu0 %v102
    %142 = vmatprep.subr.mxu0 0.0
    %143 = vmatpush1.msra.mxu0 0.0
    %144 = vmatprep.subr.mxu0 0.0
    %145 = vmatpush1.msra.mxu0 0.0
    %146 = vmatprep.subr.mxu0 0.0
    %147 = vmatpush1.msra.mxu0 0.0
    %148 = vmatprep.subr.mxu0 0.0
    %149 = vmatpush1.msra.mxu0 0.0
    %150 = vmatprep.subr.mxu0 0.0
    %151 = vmatpush1.msra.mxu0 0.0
    %152 = vmatprep.subr.mxu0 0.0
    %153 = vmatpush1.msra.mxu0 0.0
    %154 = vmatprep.subr.mxu0 0.0
    %155 = vmatpush1.msra.mxu0 0.0
    %156 = vmatprep.subr.mxu0 0.0
    %157 = vmatpush1.msra.mxu0 0.0
    %158 = vmatprep.subr.mxu0 0.0
    %159 = vmatpush1.msra.mxu0 0.0
    %160 = vmatprep.subr.mxu0 0.0
    %161 = vmatpush1.msra.mxu0 0.0
    %162 = vmatprep.subr.mxu0 0.0
    %163 = vmatpush1.msra.mxu0 0.0
    %164 = vmatprep.subr.mxu0 0.0
    %165 = vmatpush1.msra.mxu0 0.0
    %166 = vmatprep.subr.mxu0 0.0
    %167 = vmatpush1.msra.mxu0 0.0
    %168 = vmatprep.subr.mxu0 0.0
    %169 = vmatpush1.msra.mxu0 0.0
    %170 = vmatprep.subr.mxu0 0.0
    %171 = vmatpush1.msra.mxu0 0.0
    %172 = vmatprep.subr.mxu0 0.0
    %173 = vmatpush1.msra.mxu0 0.0
    %174 = vmatprep.mubr.f32.mxu0 0.0
    %175 = vmatmul.mubr.f32.gmra.mrb[0].mxu0 %v85
    %v176 = vpop.f32.mrb[0].mxu0
    %v177 = vadd.f32 %v108, %v176
    %v178 = vpop.f32.mrb[0].mxu0
    %179 = vmatprep.mubr.f32.mxu0 0.0
    %180 = vmatmul.mubr.f32.gmra.mrb[0].mxu0 %v86
    %v181 = vpop.f32.mrb[0].mxu0
    %v182 = vadd.f32 %v108, %v181
    %v183 = vpop.f32.mrb[0].mxu0
    %184 = vdwg.mxu0
    %v185 = vadd.f32 %v43, %v177
    %v186 = vadd.f32 %v44, %v182
    %187 = vst [vmem:[#allocation7] sm:$0xff] %v185
    %188 = vst [vmem:[#allocation7 + $0x8] sm:$0xff] %v186
    // Predicated region
    $region22: #{tpu_custom_call.1} parent=1 // pred_check
      _
    $region23: #{tpu_custom_call.1} parent=1 // pred_check_branch
      %190 = sbr.rel (0) target = $region25
    $region24: #{tpu_custom_call.1} parent=1 // pred_region
      %s192 = ssub.s32 256, 256
      %193 = vsyncadd [#allocation4], %s192
      %s194 = sshll.u32 [#allocation7], 4
      %s195 = int_to_ptr.vmem [resolvable:$true] %s194
      %200 = dma.vmem_to_hbm [thread:$0]  %s195, 256, %s3, [#allocation4], 128, 128, 8
    $region25: #{tpu_custom_call.1} parent=1 // pred_fallthru
      _
    // Predicated region
    $region26: #{tpu_custom_call.1} parent=1 // pred_check
      _
    $region27: #{tpu_custom_call.1} parent=1 // pred_check_branch
      %202 = sbr.rel (0) target = $region29
    $region28: #{tpu_custom_call.1} parent=1 // pred_region
      %203 = dma.done [#allocation4], 256
    $region29: #{tpu_custom_call.1} parent=1 // pred_fallthru
      _
    %204 = vsyncpa [#allocation3], 1
    %205 = vsyncpa [#allocation6], 1
    %206 = vsyncpa [#allocation4], 1

</llo_original>
